<compile_context>
chip_gen: v5e
topology: v5e:2x2
jax: 0.10.0
libtpu: 0.0.40
codegen_flags: <defaults>
</compile_context>

<pallas_src>
import functools

import jax
import jax.numpy as jnp
from jax import lax
from jax.experimental import pallas as pl
from jax.experimental.pallas import tpu as pltpu


def _round_up(x, m):
    return (x + m - 1) // m * m


def _cbow_kernel(idx_ref, emb_ref, w_ref, b_ref, out_ref,
                 mean_ref, logit_ref, m_ref, l_ref,
                 *, C, TILE_B, TILE_V, nv, D):
    i = pl.program_id(0)          # batch tile  (parallel)
    j = pl.program_id(1)          # vocab tile  (arbitrary, innermost)
    inv_c = 1.0 / C

    # ---- once per batch tile: gather + mean of context embeddings --------
    @pl.when(j == 0)
    def _():
        def gather_row(r, carry):
            base = (i * TILE_B + r) * C
            acc = jnp.zeros((1, D), jnp.float32)
            for c in range(C):                       # C is small & static
                w_idx = idx_ref[base + c]            # SMEM scalar read
                acc = acc + emb_ref[pl.ds(w_idx, 1), :]
            mean_ref[pl.ds(r, 1), :] = acc * inv_c
            return carry

        lax.fori_loop(0, TILE_B, gather_row, 0, unroll=TILE_B <= 32)
        m_ref[...] = jnp.full(m_ref.shape, -jnp.inf, jnp.float32)
        l_ref[...] = jnp.zeros(l_ref.shape, jnp.float32)

    # ---- logits for this vocab tile: mean @ W_tile^T + b_tile ------------
    logits = lax.dot_general(
        mean_ref[...], w_ref[...],
        dimension_numbers=(((1,), (1,)), ((), ())),   # contract D of both
        preferred_element_type=jnp.float32) + b_ref[...]
    logit_ref[j] = logits                             # stage for finalize

    # ---- online max / sum-exp over the vocab axis -------------------------
    m_prev = m_ref[...]
    m_new = jnp.maximum(m_prev, jnp.max(logits, axis=-1, keepdims=True))
    l_ref[...] = (l_ref[...] * jnp.exp(m_prev - m_new)
                  + jnp.sum(jnp.exp(logits - m_new), axis=-1, keepdims=True))
    m_ref[...] = m_new

    # ---- finalize: log_softmax = logits - logsumexp ------------------------
    @pl.when(j == nv - 1)
    def _():
        lse = m_ref[...] + jnp.log(l_ref[...])
        for jj in range(nv):      # static lane offsets -> unmasked lane-dense stores
            out_ref[:, jj * TILE_V:(jj + 1) * TILE_V] = logit_ref[jj] - lse


def cbow_forward(idx, emb, weight, bias):
    """idx: (B, C) int32 in [0, V); emb, weight: (V, D); bias: (V,)."""
    B, C = idx.shape
    V, D = emb.shape

    # batch tiling (sublane multiple of 8); padded rows reuse index 0
    TILE_B = min(128, _round_up(B, 8))
    B_pad = _round_up(B, TILE_B)
    nb = B_pad // TILE_B

    # vocab tiling (lane multiple of 128); padded logit columns forced to ~-inf
    V_pad = _round_up(V, 128)
    TILE_V = 512 if V_pad % 512 == 0 else (256 if V_pad % 256 == 0 else 128)
    nv = V_pad // TILE_V

    idx_p = jnp.pad(idx.astype(jnp.int32), ((0, B_pad - B), (0, 0)))
    idx_flat = idx_p.reshape(-1)                       # 1-D SMEM prefetch (no 2-D padding)
    w_p = jnp.pad(weight, ((0, V_pad - V), (0, 0)))
    b_p = jnp.pad(bias, (0, V_pad - V), constant_values=-1e30).reshape(1, V_pad)

    # explicit scoped-VMEM budget (defaults are 16-32 MiB, far below physical)
    est = 4 * (V * D                      # resident embedding table
               + 2 * TILE_V * (D + 1)     # double-buffered weight + bias tiles
               + 2 * TILE_B * V_pad       # resident output block
               + nv * TILE_B * TILE_V     # staged logits scratch
               + TILE_B * (D + 2))        # mean / max / sum-exp scratch
    vmem_limit = int(min(max(2 * est, 32 * 1024 * 1024), 64 * 1024 * 1024))

    kernel = functools.partial(_cbow_kernel, C=C, TILE_B=TILE_B,
                               TILE_V=TILE_V, nv=nv, D=D)

    out = pl.pallas_call(
        kernel,
        out_shape=jax.ShapeDtypeStruct((B_pad, V_pad), jnp.float32),
        grid_spec=pltpu.PrefetchScalarGridSpec(
            num_scalar_prefetch=1,                  # flat idx -> SMEM
            grid=(nb, nv),
            in_specs=[
                pl.BlockSpec((V, D), lambda i, j, idx: (0, 0)),        # emb (resident)
                pl.BlockSpec((TILE_V, D), lambda i, j, idx: (j, 0)),   # weight tiles
                pl.BlockSpec((1, TILE_V), lambda i, j, idx: (0, j)),   # bias tiles
            ],
            out_specs=pl.BlockSpec((TILE_B, V_pad), lambda i, j, idx: (i, 0)),
            scratch_shapes=[
                pltpu.VMEM((TILE_B, D), jnp.float32),             # mean embeddings
                pltpu.VMEM((nv, TILE_B, TILE_V), jnp.float32),    # staged logits
                pltpu.VMEM((TILE_B, 1), jnp.float32),             # running max
                pltpu.VMEM((TILE_B, 1), jnp.float32),             # running sum-exp
            ],
        ),
        compiler_params=pltpu.CompilerParams(
            dimension_semantics=("parallel", "arbitrary"),
            vmem_limit_bytes=vmem_limit,
        ),
    )(idx_flat, emb, w_p, b_p)

    return out[:B, :V]


def cbow_reference(idx, emb, weight, bias):
    embeds = emb[idx]                           # (B, C, D)
    x = jnp.mean(embeds, axis=1)                # (B, D)
    logits = x @ weight.T + bias                # (B, V)
    return jax.nn.log_softmax(logits, axis=1)


if __name__ == "__main__":
    vocab_size = 128
    embedding_dim = 32
    window_size = 2
    context_len = 2 * window_size
    batch = 8

    key = jax.random.PRNGKey(0)
    k_emb, k_w, k_b, k_idx = jax.random.split(key, 4)

    # nn.Embedding ~ N(0, 1); nn.Linear ~ U(-1/sqrt(D), 1/sqrt(D))
    emb = jax.random.normal(k_emb, (vocab_size, embedding_dim), jnp.float32)
    bound = 1.0 / jnp.sqrt(jnp.float32(embedding_dim))
    weight = jax.random.uniform(k_w, (vocab_size, embedding_dim),
                                jnp.float32, -bound, bound)
    bias = jax.random.uniform(k_b, (vocab_size,), jnp.float32, -bound, bound)

    inputs = jax.random.randint(k_idx, (batch, context_len), 0, vocab_size,
                                dtype=jnp.int32)

    out = cbow_forward(inputs, emb, weight, bias)
    out = jax.block_until_ready(out)

    ref = cbow_reference(inputs, emb, weight, bias)
    assert out.shape == (batch, vocab_size)
    assert jnp.allclose(out, ref, atol=1e-4, rtol=1e-4), "mismatch vs reference"

    print("KERNEL_OK")
</pallas_src>

<mosaic_0001>
module attributes {stable_mosaic.version = 11 : i64} {
  func.func @_cbow_kernel(%arg0: i32, %arg1: i32, %arg2: memref<32xi32, #tpu.memory_space<smem>>, %arg3: memref<128x32xf32, #tpu.memory_space<vmem>>, %arg4: memref<128x32xf32, #tpu.memory_space<vmem>>, %arg5: memref<1x128xf32, #tpu.memory_space<vmem>>, %arg6: memref<8x128xf32, #tpu.memory_space<vmem>>, %arg7: memref<8x32xf32, #tpu.memory_space<vmem>>, %arg8: memref<1x8x128xf32, #tpu.memory_space<vmem>>, %arg9: memref<8x1xf32, #tpu.memory_space<vmem>>, %arg10: memref<8x1xf32, #tpu.memory_space<vmem>>) attributes {dimension_semantics = [#tpu.dimension_semantics<parallel>, #tpu.dimension_semantics<arbitrary>], iteration_bounds = array<i64: 1, 1>, scalar_prefetch = 1 : i64, scratch_operands = 4 : i64, tpu.core_type = #tpu.core_type<tc>, window_params = [{pipeline_mode = #tpu.pipeline_mode<synchronous>, transform_indices = @transform_0, window_bounds = array<i64: 128, 32>}, {transform_indices = @transform_1, window_bounds = array<i64: 128, 32>}, {transform_indices = @transform_2, window_bounds = array<i64: 1, 128>}, {transform_indices = @transform_3, window_bounds = array<i64: 8, 128>}]} {
    %c0_i32 = arith.constant 0 : i32
    %0 = arith.cmpi eq, %arg1, %c0_i32 : i32
    %1 = arith.extui %0 : i1 to i32
    %c0_i32_0 = arith.constant 0 : i32
    %2 = arith.cmpi ne, %1, %c0_i32_0 : i32
    scf.if %2 {
      %c0_i32_20 = arith.constant 0 : i32
      %c8_i32 = arith.constant 8 : i32
      %32 = arith.muli %arg0, %c8_i32 : i32
      %33 = arith.addi %32, %c0_i32_20 : i32
      %c4_i32 = arith.constant 4 : i32
      %34 = arith.muli %33, %c4_i32 : i32
      %cst_21 = arith.constant 0.000000e+00 : f32
      %35 = vector.broadcast %cst_21 : f32 to vector<1x32xf32>
      %c0_i32_22 = arith.constant 0 : i32
      %36 = arith.addi %34, %c0_i32_22 : i32
      %37 = arith.index_cast %36 : i32 to index
      %38 = memref.load %arg2[%37] : memref<32xi32, #tpu.memory_space<smem>>
      %39 = arith.index_cast %38 : i32 to index
      %c0_23 = arith.constant 0 : index
      %40 = vector.load %arg3[%39, %c0_23] : memref<128x32xf32, #tpu.memory_space<vmem>>, vector<1x32xf32>
      %41 = arith.addf %35, %40 : vector<1x32xf32>
      %c1_i32 = arith.constant 1 : i32
      %42 = arith.addi %34, %c1_i32 : i32
      %43 = arith.index_cast %42 : i32 to index
      %44 = memref.load %arg2[%43] : memref<32xi32, #tpu.memory_space<smem>>
      %45 = arith.index_cast %44 : i32 to index
      %c0_24 = arith.constant 0 : index
      %46 = vector.load %arg3[%45, %c0_24] : memref<128x32xf32, #tpu.memory_space<vmem>>, vector<1x32xf32>
      %47 = arith.addf %41, %46 : vector<1x32xf32>
      %c2_i32 = arith.constant 2 : i32
      %48 = arith.addi %34, %c2_i32 : i32
      %49 = arith.index_cast %48 : i32 to index
      %50 = memref.load %arg2[%49] : memref<32xi32, #tpu.memory_space<smem>>
      %51 = arith.index_cast %50 : i32 to index
      %c0_25 = arith.constant 0 : index
      %52 = vector.load %arg3[%51, %c0_25] : memref<128x32xf32, #tpu.memory_space<vmem>>, vector<1x32xf32>
      %53 = arith.addf %47, %52 : vector<1x32xf32>
      %c3_i32 = arith.constant 3 : i32
      %54 = arith.addi %34, %c3_i32 : i32
      %55 = arith.index_cast %54 : i32 to index
      %56 = memref.load %arg2[%55] : memref<32xi32, #tpu.memory_space<smem>>
      %57 = arith.index_cast %56 : i32 to index
      %c0_26 = arith.constant 0 : index
      %58 = vector.load %arg3[%57, %c0_26] : memref<128x32xf32, #tpu.memory_space<vmem>>, vector<1x32xf32>
      %59 = arith.addf %53, %58 : vector<1x32xf32>
      %cst_27 = arith.constant 2.500000e-01 : f32
      %60 = vector.broadcast %cst_27 : f32 to vector<1x32xf32>
      %61 = arith.mulf %59, %60 : vector<1x32xf32>
      %62 = arith.index_cast %c0_i32_20 : i32 to index
      %c0_28 = arith.constant 0 : index
      %63 = vector.load %arg7[%62, %c0_28] : memref<8x32xf32, #tpu.memory_space<vmem>>, vector<1x32xf32>
      tpu.vector_store %arg7[%62, %c0_28], %61 {strides = array<i32>} : memref<8x32xf32, #tpu.memory_space<vmem>>, vector<1x32xf32>,
      %c1_i32_29 = arith.constant 1 : i32
      %c8_i32_30 = arith.constant 8 : i32
      %64 = arith.muli %arg0, %c8_i32_30 : i32
      %65 = arith.addi %64, %c1_i32_29 : i32
      %c4_i32_31 = arith.constant 4 : i32
      %66 = arith.muli %65, %c4_i32_31 : i32
      %cst_32 = arith.constant 0.000000e+00 : f32
      %67 = vector.broadcast %cst_32 : f32 to vector<1x32xf32>
      %c0_i32_33 = arith.constant 0 : i32
      %68 = arith.addi %66, %c0_i32_33 : i32
      %69 = arith.index_cast %68 : i32 to index
      %70 = memref.load %arg2[%69] : memref<32xi32, #tpu.memory_space<smem>>
      %71 = arith.index_cast %70 : i32 to index
      %c0_34 = arith.constant 0 : index
      %72 = vector.load %arg3[%71, %c0_34] : memref<128x32xf32, #tpu.memory_space<vmem>>, vector<1x32xf32>
      %73 = arith.addf %67, %72 : vector<1x32xf32>
      %c1_i32_35 = arith.constant 1 : i32
      %74 = arith.addi %66, %c1_i32_35 : i32
      %75 = arith.index_cast %74 : i32 to index
      %76 = memref.load %arg2[%75] : memref<32xi32, #tpu.memory_space<smem>>
      %77 = arith.index_cast %76 : i32 to index
      %c0_36 = arith.constant 0 : index
      %78 = vector.load %arg3[%77, %c0_36] : memref<128x32xf32, #tpu.memory_space<vmem>>, vector<1x32xf32>
      %79 = arith.addf %73, %78 : vector<1x32xf32>
      %c2_i32_37 = arith.constant 2 : i32
      %80 = arith.addi %66, %c2_i32_37 : i32
      %81 = arith.index_cast %80 : i32 to index
      %82 = memref.load %arg2[%81] : memref<32xi32, #tpu.memory_space<smem>>
      %83 = arith.index_cast %82 : i32 to index
      %c0_38 = arith.constant 0 : index
      %84 = vector.load %arg3[%83, %c0_38] : memref<128x32xf32, #tpu.memory_space<vmem>>, vector<1x32xf32>
      %85 = arith.addf %79, %84 : vector<1x32xf32>
      %c3_i32_39 = arith.constant 3 : i32
      %86 = arith.addi %66, %c3_i32_39 : i32
      %87 = arith.index_cast %86 : i32 to index
      %88 = memref.load %arg2[%87] : memref<32xi32, #tpu.memory_space<smem>>
      %89 = arith.index_cast %88 : i32 to index
      %c0_40 = arith.constant 0 : index
      %90 = vector.load %arg3[%89, %c0_40] : memref<128x32xf32, #tpu.memory_space<vmem>>, vector<1x32xf32>
      %91 = arith.addf %85, %90 : vector<1x32xf32>
      %cst_41 = arith.constant 2.500000e-01 : f32
      %92 = vector.broadcast %cst_41 : f32 to vector<1x32xf32>
      %93 = arith.mulf %91, %92 : vector<1x32xf32>
      %94 = arith.index_cast %c1_i32_29 : i32 to index
      %c0_42 = arith.constant 0 : index
      %95 = vector.load %arg7[%94, %c0_42] : memref<8x32xf32, #tpu.memory_space<vmem>>, vector<1x32xf32>
      tpu.vector_store %arg7[%94, %c0_42], %93 {strides = array<i32>} : memref<8x32xf32, #tpu.memory_space<vmem>>, vector<1x32xf32>,
      %c2_i32_43 = arith.constant 2 : i32
      %c8_i32_44 = arith.constant 8 : i32
      %96 = arith.muli %arg0, %c8_i32_44 : i32
      %97 = arith.addi %96, %c2_i32_43 : i32
      %c4_i32_45 = arith.constant 4 : i32
      %98 = arith.muli %97, %c4_i32_45 : i32
      %cst_46 = arith.constant 0.000000e+00 : f32
      %99 = vector.broadcast %cst_46 : f32 to vector<1x32xf32>
      %c0_i32_47 = arith.constant 0 : i32
      %100 = arith.addi %98, %c0_i32_47 : i32
      %101 = arith.index_cast %100 : i32 to index
      %102 = memref.load %arg2[%101] : memref<32xi32, #tpu.memory_space<smem>>
      %103 = arith.index_cast %102 : i32 to index
      %c0_48 = arith.constant 0 : index
      %104 = vector.load %arg3[%103, %c0_48] : memref<128x32xf32, #tpu.memory_space<vmem>>, vector<1x32xf32>
      %105 = arith.addf %99, %104 : vector<1x32xf32>
      %c1_i32_49 = arith.constant 1 : i32
      %106 = arith.addi %98, %c1_i32_49 : i32
      %107 = arith.index_cast %106 : i32 to index
      %108 = memref.load %arg2[%107] : memref<32xi32, #tpu.memory_space<smem>>
      %109 = arith.index_cast %108 : i32 to index
      %c0_50 = arith.constant 0 : index
      %110 = vector.load %arg3[%109, %c0_50] : memref<128x32xf32, #tpu.memory_space<vmem>>, vector<1x32xf32>
      %111 = arith.addf %105, %110 : vector<1x32xf32>
      %c2_i32_51 = arith.constant 2 : i32
      %112 = arith.addi %98, %c2_i32_51 : i32
      %113 = arith.index_cast %112 : i32 to index
      %114 = memref.load %arg2[%113] : memref<32xi32, #tpu.memory_space<smem>>
      %115 = arith.index_cast %114 : i32 to index
      %c0_52 = arith.constant 0 : index
      %116 = vector.load %arg3[%115, %c0_52] : memref<128x32xf32, #tpu.memory_space<vmem>>, vector<1x32xf32>
      %117 = arith.addf %111, %116 : vector<1x32xf32>
      %c3_i32_53 = arith.constant 3 : i32
      %118 = arith.addi %98, %c3_i32_53 : i32
      %119 = arith.index_cast %118 : i32 to index
      %120 = memref.load %arg2[%119] : memref<32xi32, #tpu.memory_space<smem>>
      %121 = arith.index_cast %120 : i32 to index
      %c0_54 = arith.constant 0 : index
      %122 = vector.load %arg3[%121, %c0_54] : memref<128x32xf32, #tpu.memory_space<vmem>>, vector<1x32xf32>
      %123 = arith.addf %117, %122 : vector<1x32xf32>
      %cst_55 = arith.constant 2.500000e-01 : f32
      %124 = vector.broadcast %cst_55 : f32 to vector<1x32xf32>
      %125 = arith.mulf %123, %124 : vector<1x32xf32>
      %126 = arith.index_cast %c2_i32_43 : i32 to index
      %c0_56 = arith.constant 0 : index
      %127 = vector.load %arg7[%126, %c0_56] : memref<8x32xf32, #tpu.memory_space<vmem>>, vector<1x32xf32>
      tpu.vector_store %arg7[%126, %c0_56], %125 {strides = array<i32>} : memref<8x32xf32, #tpu.memory_space<vmem>>, vector<1x32xf32>,
      %c3_i32_57 = arith.constant 3 : i32
      %c8_i32_58 = arith.constant 8 : i32
      %128 = arith.muli %arg0, %c8_i32_58 : i32
      %129 = arith.addi %128, %c3_i32_57 : i32
      %c4_i32_59 = arith.constant 4 : i32
      %130 = arith.muli %129, %c4_i32_59 : i32
      %cst_60 = arith.constant 0.000000e+00 : f32
      %131 = vector.broadcast %cst_60 : f32 to vector<1x32xf32>
      %c0_i32_61 = arith.constant 0 : i32
      %132 = arith.addi %130, %c0_i32_61 : i32
      %133 = arith.index_cast %132 : i32 to index
      %134 = memref.load %arg2[%133] : memref<32xi32, #tpu.memory_space<smem>>
      %135 = arith.index_cast %134 : i32 to index
      %c0_62 = arith.constant 0 : index
      %136 = vector.load %arg3[%135, %c0_62] : memref<128x32xf32, #tpu.memory_space<vmem>>, vector<1x32xf32>
      %137 = arith.addf %131, %136 : vector<1x32xf32>
      %c1_i32_63 = arith.constant 1 : i32
      %138 = arith.addi %130, %c1_i32_63 : i32
      %139 = arith.index_cast %138 : i32 to index
      %140 = memref.load %arg2[%139] : memref<32xi32, #tpu.memory_space<smem>>
      %141 = arith.index_cast %140 : i32 to index
      %c0_64 = arith.constant 0 : index
      %142 = vector.load %arg3[%141, %c0_64] : memref<128x32xf32, #tpu.memory_space<vmem>>, vector<1x32xf32>
      %143 = arith.addf %137, %142 : vector<1x32xf32>
      %c2_i32_65 = arith.constant 2 : i32
      %144 = arith.addi %130, %c2_i32_65 : i32
      %145 = arith.index_cast %144 : i32 to index
      %146 = memref.load %arg2[%145] : memref<32xi32, #tpu.memory_space<smem>>
      %147 = arith.index_cast %146 : i32 to index
      %c0_66 = arith.constant 0 : index
      %148 = vector.load %arg3[%147, %c0_66] : memref<128x32xf32, #tpu.memory_space<vmem>>, vector<1x32xf32>
      %149 = arith.addf %143, %148 : vector<1x32xf32>
      %c3_i32_67 = arith.constant 3 : i32
      %150 = arith.addi %130, %c3_i32_67 : i32
      %151 = arith.index_cast %150 : i32 to index
      %152 = memref.load %arg2[%151] : memref<32xi32, #tpu.memory_space<smem>>
      %153 = arith.index_cast %152 : i32 to index
      %c0_68 = arith.constant 0 : index
      %154 = vector.load %arg3[%153, %c0_68] : memref<128x32xf32, #tpu.memory_space<vmem>>, vector<1x32xf32>
      %155 = arith.addf %149, %154 : vector<1x32xf32>
      %cst_69 = arith.constant 2.500000e-01 : f32
      %156 = vector.broadcast %cst_69 : f32 to vector<1x32xf32>
      %157 = arith.mulf %155, %156 : vector<1x32xf32>
      %158 = arith.index_cast %c3_i32_57 : i32 to index
      %c0_70 = arith.constant 0 : index
      %159 = vector.load %arg7[%158, %c0_70] : memref<8x32xf32, #tpu.memory_space<vmem>>, vector<1x32xf32>
      tpu.vector_store %arg7[%158, %c0_70], %157 {strides = array<i32>} : memref<8x32xf32, #tpu.memory_space<vmem>>, vector<1x32xf32>,
      %c4_i32_71 = arith.constant 4 : i32
      %c8_i32_72 = arith.constant 8 : i32
      %160 = arith.muli %arg0, %c8_i32_72 : i32
      %161 = arith.addi %160, %c4_i32_71 : i32
      %c4_i32_73 = arith.constant 4 : i32
      %162 = arith.muli %161, %c4_i32_73 : i32
      %cst_74 = arith.constant 0.000000e+00 : f32
      %163 = vector.broadcast %cst_74 : f32 to vector<1x32xf32>
      %c0_i32_75 = arith.constant 0 : i32
      %164 = arith.addi %162, %c0_i32_75 : i32
      %165 = arith.index_cast %164 : i32 to index
      %166 = memref.load %arg2[%165] : memref<32xi32, #tpu.memory_space<smem>>
      %167 = arith.index_cast %166 : i32 to index
      %c0_76 = arith.constant 0 : index
      %168 = vector.load %arg3[%167, %c0_76] : memref<128x32xf32, #tpu.memory_space<vmem>>, vector<1x32xf32>
      %169 = arith.addf %163, %168 : vector<1x32xf32>
      %c1_i32_77 = arith.constant 1 : i32
      %170 = arith.addi %162, %c1_i32_77 : i32
      %171 = arith.index_cast %170 : i32 to index
      %172 = memref.load %arg2[%171] : memref<32xi32, #tpu.memory_space<smem>>
      %173 = arith.index_cast %172 : i32 to index
      %c0_78 = arith.constant 0 : index
      %174 = vector.load %arg3[%173, %c0_78] : memref<128x32xf32, #tpu.memory_space<vmem>>, vector<1x32xf32>
      %175 = arith.addf %169, %174 : vector<1x32xf32>
      %c2_i32_79 = arith.constant 2 : i32
      %176 = arith.addi %162, %c2_i32_79 : i32
      %177 = arith.index_cast %176 : i32 to index
      %178 = memref.load %arg2[%177] : memref<32xi32, #tpu.memory_space<smem>>
      %179 = arith.index_cast %178 : i32 to index
      %c0_80 = arith.constant 0 : index
      %180 = vector.load %arg3[%179, %c0_80] : memref<128x32xf32, #tpu.memory_space<vmem>>, vector<1x32xf32>
      %181 = arith.addf %175, %180 : vector<1x32xf32>
      %c3_i32_81 = arith.constant 3 : i32
      %182 = arith.addi %162, %c3_i32_81 : i32
      %183 = arith.index_cast %182 : i32 to index
      %184 = memref.load %arg2[%183] : memref<32xi32, #tpu.memory_space<smem>>
      %185 = arith.index_cast %184 : i32 to index
      %c0_82 = arith.constant 0 : index
      %186 = vector.load %arg3[%185, %c0_82] : memref<128x32xf32, #tpu.memory_space<vmem>>, vector<1x32xf32>
      %187 = arith.addf %181, %186 : vector<1x32xf32>
      %cst_83 = arith.constant 2.500000e-01 : f32
      %188 = vector.broadcast %cst_83 : f32 to vector<1x32xf32>
      %189 = arith.mulf %187, %188 : vector<1x32xf32>
      %190 = arith.index_cast %c4_i32_71 : i32 to index
      %c0_84 = arith.constant 0 : index
      %191 = vector.load %arg7[%190, %c0_84] : memref<8x32xf32, #tpu.memory_space<vmem>>, vector<1x32xf32>
      tpu.vector_store %arg7[%190, %c0_84], %189 {strides = array<i32>} : memref<8x32xf32, #tpu.memory_space<vmem>>, vector<1x32xf32>,
      %c5_i32 = arith.constant 5 : i32
      %c8_i32_85 = arith.constant 8 : i32
      %192 = arith.muli %arg0, %c8_i32_85 : i32
      %193 = arith.addi %192, %c5_i32 : i32
      %c4_i32_86 = arith.constant 4 : i32
      %194 = arith.muli %193, %c4_i32_86 : i32
      %cst_87 = arith.constant 0.000000e+00 : f32
      %195 = vector.broadcast %cst_87 : f32 to vector<1x32xf32>
      %c0_i32_88 = arith.constant 0 : i32
      %196 = arith.addi %194, %c0_i32_88 : i32
      %197 = arith.index_cast %196 : i32 to index
      %198 = memref.load %arg2[%197] : memref<32xi32, #tpu.memory_space<smem>>
      %199 = arith.index_cast %198 : i32 to index
      %c0_89 = arith.constant 0 : index
      %200 = vector.load %arg3[%199, %c0_89] : memref<128x32xf32, #tpu.memory_space<vmem>>, vector<1x32xf32>
      %201 = arith.addf %195, %200 : vector<1x32xf32>
      %c1_i32_90 = arith.constant 1 : i32
      %202 = arith.addi %194, %c1_i32_90 : i32
      %203 = arith.index_cast %202 : i32 to index
      %204 = memref.load %arg2[%203] : memref<32xi32, #tpu.memory_space<smem>>
      %205 = arith.index_cast %204 : i32 to index
      %c0_91 = arith.constant 0 : index
      %206 = vector.load %arg3[%205, %c0_91] : memref<128x32xf32, #tpu.memory_space<vmem>>, vector<1x32xf32>
      %207 = arith.addf %201, %206 : vector<1x32xf32>
      %c2_i32_92 = arith.constant 2 : i32
      %208 = arith.addi %194, %c2_i32_92 : i32
      %209 = arith.index_cast %208 : i32 to index
      %210 = memref.load %arg2[%209] : memref<32xi32, #tpu.memory_space<smem>>
      %211 = arith.index_cast %210 : i32 to index
      %c0_93 = arith.constant 0 : index
      %212 = vector.load %arg3[%211, %c0_93] : memref<128x32xf32, #tpu.memory_space<vmem>>, vector<1x32xf32>
      %213 = arith.addf %207, %212 : vector<1x32xf32>
      %c3_i32_94 = arith.constant 3 : i32
      %214 = arith.addi %194, %c3_i32_94 : i32
      %215 = arith.index_cast %214 : i32 to index
      %216 = memref.load %arg2[%215] : memref<32xi32, #tpu.memory_space<smem>>
      %217 = arith.index_cast %216 : i32 to index
      %c0_95 = arith.constant 0 : index
      %218 = vector.load %arg3[%217, %c0_95] : memref<128x32xf32, #tpu.memory_space<vmem>>, vector<1x32xf32>
      %219 = arith.addf %213, %218 : vector<1x32xf32>
      %cst_96 = arith.constant 2.500000e-01 : f32
      %220 = vector.broadcast %cst_96 : f32 to vector<1x32xf32>
      %221 = arith.mulf %219, %220 : vector<1x32xf32>
      %222 = arith.index_cast %c5_i32 : i32 to index
      %c0_97 = arith.constant 0 : index
      %223 = vector.load %arg7[%222, %c0_97] : memref<8x32xf32, #tpu.memory_space<vmem>>, vector<1x32xf32>
      tpu.vector_store %arg7[%222, %c0_97], %221 {strides = array<i32>} : memref<8x32xf32, #tpu.memory_space<vmem>>, vector<1x32xf32>,
      %c6_i32 = arith.constant 6 : i32
      %c8_i32_98 = arith.constant 8 : i32
      %224 = arith.muli %arg0, %c8_i32_98 : i32
      %225 = arith.addi %224, %c6_i32 : i32
      %c4_i32_99 = arith.constant 4 : i32
      %226 = arith.muli %225, %c4_i32_99 : i32
      %cst_100 = arith.constant 0.000000e+00 : f32
      %227 = vector.broadcast %cst_100 : f32 to vector<1x32xf32>
      %c0_i32_101 = arith.constant 0 : i32
      %228 = arith.addi %226, %c0_i32_101 : i32
      %229 = arith.index_cast %228 : i32 to index
      %230 = memref.load %arg2[%229] : memref<32xi32, #tpu.memory_space<smem>>
      %231 = arith.index_cast %230 : i32 to index
      %c0_102 = arith.constant 0 : index
      %232 = vector.load %arg3[%231, %c0_102] : memref<128x32xf32, #tpu.memory_space<vmem>>, vector<1x32xf32>
      %233 = arith.addf %227, %232 : vector<1x32xf32>
      %c1_i32_103 = arith.constant 1 : i32
      %234 = arith.addi %226, %c1_i32_103 : i32
      %235 = arith.index_cast %234 : i32 to index
      %236 = memref.load %arg2[%235] : memref<32xi32, #tpu.memory_space<smem>>
      %237 = arith.index_cast %236 : i32 to index
      %c0_104 = arith.constant 0 : index
      %238 = vector.load %arg3[%237, %c0_104] : memref<128x32xf32, #tpu.memory_space<vmem>>, vector<1x32xf32>
      %239 = arith.addf %233, %238 : vector<1x32xf32>
      %c2_i32_105 = arith.constant 2 : i32
      %240 = arith.addi %226, %c2_i32_105 : i32
      %241 = arith.index_cast %240 : i32 to index
      %242 = memref.load %arg2[%241] : memref<32xi32, #tpu.memory_space<smem>>
      %243 = arith.index_cast %242 : i32 to index
      %c0_106 = arith.constant 0 : index
      %244 = vector.load %arg3[%243, %c0_106] : memref<128x32xf32, #tpu.memory_space<vmem>>, vector<1x32xf32>
      %245 = arith.addf %239, %244 : vector<1x32xf32>
      %c3_i32_107 = arith.constant 3 : i32
      %246 = arith.addi %226, %c3_i32_107 : i32
      %247 = arith.index_cast %246 : i32 to index
      %248 = memref.load %arg2[%247] : memref<32xi32, #tpu.memory_space<smem>>
      %249 = arith.index_cast %248 : i32 to index
      %c0_108 = arith.constant 0 : index
      %250 = vector.load %arg3[%249, %c0_108] : memref<128x32xf32, #tpu.memory_space<vmem>>, vector<1x32xf32>
      %251 = arith.addf %245, %250 : vector<1x32xf32>
      %cst_109 = arith.constant 2.500000e-01 : f32
      %252 = vector.broadcast %cst_109 : f32 to vector<1x32xf32>
      %253 = arith.mulf %251, %252 : vector<1x32xf32>
      %254 = arith.index_cast %c6_i32 : i32 to index
      %c0_110 = arith.constant 0 : index
      %255 = vector.load %arg7[%254, %c0_110] : memref<8x32xf32, #tpu.memory_space<vmem>>, vector<1x32xf32>
      tpu.vector_store %arg7[%254, %c0_110], %253 {strides = array<i32>} : memref<8x32xf32, #tpu.memory_space<vmem>>, vector<1x32xf32>,
      %c7_i32 = arith.constant 7 : i32
      %c8_i32_111 = arith.constant 8 : i32
      %256 = arith.muli %arg0, %c8_i32_111 : i32
      %257 = arith.addi %256, %c7_i32 : i32
      %c4_i32_112 = arith.constant 4 : i32
      %258 = arith.muli %257, %c4_i32_112 : i32
      %cst_113 = arith.constant 0.000000e+00 : f32
      %259 = vector.broadcast %cst_113 : f32 to vector<1x32xf32>
      %c0_i32_114 = arith.constant 0 : i32
      %260 = arith.addi %258, %c0_i32_114 : i32
      %261 = arith.index_cast %260 : i32 to index
      %262 = memref.load %arg2[%261] : memref<32xi32, #tpu.memory_space<smem>>
      %263 = arith.index_cast %262 : i32 to index
      %c0_115 = arith.constant 0 : index
      %264 = vector.load %arg3[%263, %c0_115] : memref<128x32xf32, #tpu.memory_space<vmem>>, vector<1x32xf32>
      %265 = arith.addf %259, %264 : vector<1x32xf32>
      %c1_i32_116 = arith.constant 1 : i32
      %266 = arith.addi %258, %c1_i32_116 : i32
      %267 = arith.index_cast %266 : i32 to index
      %268 = memref.load %arg2[%267] : memref<32xi32, #tpu.memory_space<smem>>
      %269 = arith.index_cast %268 : i32 to index
      %c0_117 = arith.constant 0 : index
      %270 = vector.load %arg3[%269, %c0_117] : memref<128x32xf32, #tpu.memory_space<vmem>>, vector<1x32xf32>
      %271 = arith.addf %265, %270 : vector<1x32xf32>
      %c2_i32_118 = arith.constant 2 : i32
      %272 = arith.addi %258, %c2_i32_118 : i32
      %273 = arith.index_cast %272 : i32 to index
      %274 = memref.load %arg2[%273] : memref<32xi32, #tpu.memory_space<smem>>
      %275 = arith.index_cast %274 : i32 to index
      %c0_119 = arith.constant 0 : index
      %276 = vector.load %arg3[%275, %c0_119] : memref<128x32xf32, #tpu.memory_space<vmem>>, vector<1x32xf32>
      %277 = arith.addf %271, %276 : vector<1x32xf32>
      %c3_i32_120 = arith.constant 3 : i32
      %278 = arith.addi %258, %c3_i32_120 : i32
      %279 = arith.index_cast %278 : i32 to index
      %280 = memref.load %arg2[%279] : memref<32xi32, #tpu.memory_space<smem>>
      %281 = arith.index_cast %280 : i32 to index
      %c0_121 = arith.constant 0 : index
      %282 = vector.load %arg3[%281, %c0_121] : memref<128x32xf32, #tpu.memory_space<vmem>>, vector<1x32xf32>
      %283 = arith.addf %277, %282 : vector<1x32xf32>
      %cst_122 = arith.constant 2.500000e-01 : f32
      %284 = vector.broadcast %cst_122 : f32 to vector<1x32xf32>
      %285 = arith.mulf %283, %284 : vector<1x32xf32>
      %286 = arith.index_cast %c7_i32 : i32 to index
      %c0_123 = arith.constant 0 : index
      %287 = vector.load %arg7[%286, %c0_123] : memref<8x32xf32, #tpu.memory_space<vmem>>, vector<1x32xf32>
      tpu.vector_store %arg7[%286, %c0_123], %285 {strides = array<i32>} : memref<8x32xf32, #tpu.memory_space<vmem>>, vector<1x32xf32>,
      %c8_i32_124 = arith.constant 8 : i32
      %cst_125 = arith.constant 0xFF800000 : f32
      %288 = vector.broadcast %cst_125 : f32 to vector<8x1xf32>
      %c0_126 = arith.constant 0 : index
      %c0_127 = arith.constant 0 : index
      %289 = vector.load %arg9[%c0_126, %c0_127] : memref<8x1xf32, #tpu.memory_space<vmem>>, vector<8x1xf32>
      tpu.vector_store %arg9[%c0_126, %c0_127], %288 {strides = array<i32>} : memref<8x1xf32, #tpu.memory_space<vmem>>, vector<8x1xf32>,
      %cst_128 = arith.constant 0.000000e+00 : f32
      %290 = vector.broadcast %cst_128 : f32 to vector<8x1xf32>
      %c0_129 = arith.constant 0 : index
      %c0_130 = arith.constant 0 : index
      %291 = vector.load %arg10[%c0_129, %c0_130] : memref<8x1xf32, #tpu.memory_space<vmem>>, vector<8x1xf32>
      tpu.vector_store %arg10[%c0_129, %c0_130], %290 {strides = array<i32>} : memref<8x1xf32, #tpu.memory_space<vmem>>, vector<8x1xf32>,
    } else {
    }
    %c0 = arith.constant 0 : index
    %c0_1 = arith.constant 0 : index
    %3 = vector.load %arg7[%c0, %c0_1] : memref<8x32xf32, #tpu.memory_space<vmem>>, vector<8x32xf32>
    %c0_2 = arith.constant 0 : index
    %c0_3 = arith.constant 0 : index
    %4 = vector.load %arg4[%c0_2, %c0_3] : memref<128x32xf32, #tpu.memory_space<vmem>>, vector<128x32xf32>
    %cst = arith.constant dense<0.000000e+00> : vector<8x128xf32>
    %5 = tpu.matmul %3, %4, %cst {dimension_numbers = #tpu.dot_dimension_numbers<[1], [1], [0], [0], [0, 0, 1, 0], [], []>} : vector<8x32xf32>, vector<128x32xf32>, vector<8x128xf32> -> vector<8x128xf32>
    %c0_4 = arith.constant 0 : index
    %c0_5 = arith.constant 0 : index
    %6 = vector.load %arg5[%c0_4, %c0_5] : memref<1x128xf32, #tpu.memory_space<vmem>>, vector<1x128xf32>
    %7 = vector.broadcast %6 : vector<1x128xf32> to vector<8x128xf32>
    %8 = arith.addf %5, %7 : vector<8x128xf32>
    %9 = arith.index_cast %arg1 : i32 to index
    %c0_6 = arith.constant 0 : index
    %c0_7 = arith.constant 0 : index
    %10 = vector.load %arg8[%9, %c0_6, %c0_7] : memref<1x8x128xf32, #tpu.memory_space<vmem>>, vector<1x8x128xf32>
    %11 = vector.shape_cast %10 : vector<1x8x128xf32> to vector<8x128xf32>
    %12 = vector.shape_cast %8 : vector<8x128xf32> to vector<1x8x128xf32>
    tpu.vector_store %arg8[%9, %c0_6, %c0_7], %12 {strides = array<i32>} : memref<1x8x128xf32, #tpu.memory_space<vmem>>, vector<1x8x128xf32>,
    %c0_8 = arith.constant 0 : index
    %c0_9 = arith.constant 0 : index
    %13 = vector.load %arg9[%c0_8, %c0_9] : memref<8x1xf32, #tpu.memory_space<vmem>>, vector<8x1xf32>
    %cst_10 = arith.constant dense<0xFF800000> : vector<8xf32>
    %14 = vector.multi_reduction <maximumf>, %8, %cst_10 [1] : vector<8x128xf32> to vector<8xf32>
    %15 = vector.shape_cast %14 : vector<8xf32> to vector<8x1xf32>
    %16 = arith.maximumf %13, %15 : vector<8x1xf32>
    %c0_11 = arith.constant 0 : index
    %c0_12 = arith.constant 0 : index
    %17 = vector.load %arg10[%c0_11, %c0_12] : memref<8x1xf32, #tpu.memory_space<vmem>>, vector<8x1xf32>
    %18 = arith.subf %13, %16 : vector<8x1xf32>
    %19 = math.exp %18 : vector<8x1xf32>
    %20 = arith.mulf %17, %19 : vector<8x1xf32>
    %21 = vector.broadcast %16 : vector<8x1xf32> to vector<8x128xf32>
    %22 = arith.subf %8, %21 : vector<8x128xf32>
    %23 = math.exp %22 : vector<8x128xf32>
    %cst_13 = arith.constant dense<0.000000e+00> : vector<8xf32>
    %24 = vector.multi_reduction <add>, %23, %cst_13 [1] : vector<8x128xf32> to vector<8xf32>
    %25 = vector.shape_cast %24 : vector<8xf32> to vector<8x1xf32>
    %26 = arith.addf %20, %25 : vector<8x1xf32>
    %c0_14 = arith.constant 0 : index
    %c0_15 = arith.constant 0 : index
    %27 = vector.load %arg10[%c0_14, %c0_15] : memref<8x1xf32, #tpu.memory_space<vmem>>, vector<8x1xf32>
    tpu.vector_store %arg10[%c0_14, %c0_15], %26 {strides = array<i32>} : memref<8x1xf32, #tpu.memory_space<vmem>>, vector<8x1xf32>,
    %c0_16 = arith.constant 0 : index
    %c0_17 = arith.constant 0 : index
    %28 = vector.load %arg9[%c0_16, %c0_17] : memref<8x1xf32, #tpu.memory_space<vmem>>, vector<8x1xf32>
    tpu.vector_store %arg9[%c0_16, %c0_17], %16 {strides = array<i32>} : memref<8x1xf32, #tpu.memory_space<vmem>>, vector<8x1xf32>,
    %c0_i32_18 = arith.constant 0 : i32
    %29 = arith.cmpi eq, %arg1, %c0_i32_18 : i32
    %30 = arith.extui %29 : i1 to i32
    %c0_i32_19 = arith.constant 0 : i32
    %31 = arith.cmpi ne, %30, %c0_i32_19 : i32
    scf.if %31 {
      %c0_20 = arith.constant 0 : index
      %c0_21 = arith.constant 0 : index
      %32 = vector.load %arg9[%c0_20, %c0_21] : memref<8x1xf32, #tpu.memory_space<vmem>>, vector<8x1xf32>
      %c0_22 = arith.constant 0 : index
      %c0_23 = arith.constant 0 : index
      %33 = vector.load %arg10[%c0_22, %c0_23] : memref<8x1xf32, #tpu.memory_space<vmem>>, vector<8x1xf32>
      %34 = math.log %33 : vector<8x1xf32>
      %35 = arith.addf %32, %34 : vector<8x1xf32>
      %c0_24 = arith.constant 0 : index
      %c0_25 = arith.constant 0 : index
      %c0_26 = arith.constant 0 : index
      %36 = vector.load %arg8[%c0_24, %c0_25, %c0_26] : memref<1x8x128xf32, #tpu.memory_space<vmem>>, vector<1x8x128xf32>
      %37 = vector.shape_cast %36 : vector<1x8x128xf32> to vector<8x128xf32>
      %38 = vector.broadcast %35 : vector<8x1xf32> to vector<8x128xf32>
      %39 = arith.subf %37, %38 : vector<8x128xf32>
      %c0_27 = arith.constant 0 : index
      %c0_28 = arith.constant 0 : index
      %40 = vector.load %arg6[%c0_27, %c0_28] : memref<8x128xf32, #tpu.memory_space<vmem>>, vector<8x128xf32>
      tpu.vector_store %arg6[%c0_27, %c0_28], %39 {strides = array<i32>} : memref<8x128xf32, #tpu.memory_space<vmem>>, vector<8x128xf32>,
    } else {
    }
    return
  }
  func.func @transform_0(%arg0: i32, %arg1: i32, %arg2: memref<32xi32, #tpu.memory_space<smem>>) -> (i32, i32) {
    %c0_i32 = arith.constant 0 : i32
    %c0_i32_0 = arith.constant 0 : i32
    %c0_i32_1 = arith.constant 0 : i32
    return %c0_i32, %c0_i32_0 : i32, i32
  }
  func.func @transform_1(%arg0: i32, %arg1: i32, %arg2: memref<32xi32, #tpu.memory_space<smem>>) -> (i32, i32) {
    %c0_i32 = arith.constant 0 : i32
    %c0_i32_0 = arith.constant 0 : i32
    return %arg1, %c0_i32 : i32, i32
  }
  func.func @transform_2(%arg0: i32, %arg1: i32, %arg2: memref<32xi32, #tpu.memory_space<smem>>) -> (i32, i32) {
    %c0_i32 = arith.constant 0 : i32
    %c0_i32_0 = arith.constant 0 : i32
    return %c0_i32, %arg1 : i32, i32
  }
  func.func @transform_3(%arg0: i32, %arg1: i32, %arg2: memref<32xi32, #tpu.memory_space<smem>>) -> (i32, i32) {
    %c0_i32 = arith.constant 0 : i32
    %c0_i32_0 = arith.constant 0 : i32
    return %arg0, %c0_i32 : i32, i32
  }
}

</mosaic_0001>

<llo_original>
// kernel: tpu_custom_call.1
$region0: #{tpu_custom_call.1}
  #allocation0 [shape = 'u32[]', space=smem, size = 0x4, offset = 0x4, fixed_abs, tag = 'smem constant byte address 0x4 - core index']
  #allocation1 [shape = 'u32[72,128]{1,0:T(1,128)}', space=vmem, size = 0x9000, scoped, tag = 'internal scratch']
  #allocation2 [shape = 'f32[8,32]{1,0:T(8,128)}', space=vmem, size = 0x1000, scoped, tag = 'scratch operand']
  #allocation3 [shape = 'f32[1,8,128]{2,1,0:T(8,128)}', space=vmem, size = 0x1000, scoped, tag = 'scratch operand']
  #allocation4 [shape = 'f32[8,1]{1,0:T(8,128)}', space=vmem, size = 0x1000, scoped, tag = 'scratch operand']
  #allocation5 [shape = 'f32[8,1]{1,0:T(8,128)}', space=vmem, size = 0x1000, scoped, tag = 'scratch operand']
  #allocation6 [shape = 's32[1]{0}', space=sflag, size = 0x4, scoped, tag = 'scoped memory for tpu_custom_call.1']
  #allocation7 [shape = 'u8[512]{0}', space=smem, size = 0x200, scoped, tag = 'prefetched SMEM operand 0']
  %s0 = inlined_call_operand.vmem [shape: s32[32], index: 0, kind: input, shape index: {}]
  %s1 = inlined_call_operand.vmem [shape: f32[128,32], index: 1, kind: input, shape index: {}]
  %s2 = inlined_call_operand.vmem [shape: f32[128,32], index: 2, kind: input, shape index: {}]
  %s3 = inlined_call_operand.vmem [shape: f32[1,128], index: 3, kind: input, shape index: {}]
  %s4 = inlined_call_operand.hbm [shape: f32[8,128], index: 4, kind: output, shape index: {}]
  %s5 = sld [smem:[#allocation0]]
  $region30: #{tpu_custom_call.1} parent=0
    _
  %s7 = ssub.s32 1, %s5
  %s8 = scalar_select 0, %s7, %s5
  %s10 = sshll.u32 %s0, 4
  %s11 = int_to_ptr.vmem [resolvable:$true] %s10
  %13 = dma.vmem_to_smem %s11, 16, [#allocation7], [#allocation6]
  %15 = dma.done [#allocation6], 16
  %16 = sfence
  $region1: #{tpu_custom_call.1} parent=0
    #allocation8 [shape = 'u8[4096]{0}', space=vmem, size = 0x1000, scoped, tag = 'output window, operand 0, single buffered']
    #allocation9 [shape = 's32[1]{0}', space=sflag, size = 0x4, scoped, tag = 'scoped memory for tpu_custom_call.1']
    %17 = vsyncpa [#allocation9], 0
    // Predicated region
    $region2: #{tpu_custom_call.1} parent=1 // pred_check
      _
    $region3: #{tpu_custom_call.1} parent=1 // pred_check_branch
      %19 = sbr.rel (0) target = $region5
    $region4: #{tpu_custom_call.1} parent=1 // pred_region
      _
    $region5: #{tpu_custom_call.1} parent=1 // pred_fallthru
      _
    // Predicated region
    $region6: #{tpu_custom_call.1} parent=1 // pred_check
      _
    $region7: #{tpu_custom_call.1} parent=1 // pred_check_branch
      %21 = sbr.rel (0) target = $region9
    $region8: #{tpu_custom_call.1} parent=1 // pred_region
      _
    $region9: #{tpu_custom_call.1} parent=1 // pred_fallthru
      _
    // Predicated region
    $region10: #{tpu_custom_call.1} parent=1 // pred_check
      _
    $region11: #{tpu_custom_call.1} parent=1 // pred_check_branch
      %23 = sbr.rel (0) target = $region13
    $region12: #{tpu_custom_call.1} parent=1 // pred_region
      _
    $region13: #{tpu_custom_call.1} parent=1 // pred_fallthru
      _
    %p24 = scmp.eq.s32.totalorder 0, 0
    // Predicated region
    $region14: #{tpu_custom_call.1} parent=1 // pred_check
      %p25 = pneg %p24
    $region15: #{tpu_custom_call.1} parent=1 // pred_check_branch
      %27 = sbr.rel (%p25) target = $region17
    $region16: #{tpu_custom_call.1} parent=1 // pred_region
      %s28 = smul.u32 0, 32
      %s29 = sld [smem:[#allocation7 + %s28]]
      %s30 = scalar_lea.vmem %s1, %s29
      %v31 = vld [vmem:[%s30] sm:$0x1]
      %v32 = vadd.f32 %v31, 0.0
      %s33 = sadd.s32 %s28, 1
      %s34 = sld [smem:[#allocation7 + %s33]]
      %s35 = scalar_lea.vmem %s1, %s34
      %v36 = vld [vmem:[%s35] sm:$0x1]
      %v37 = vadd.f32 %v32, %v36
      %s38 = sadd.s32 %s28, 2
      %s39 = sld [smem:[#allocation7 + %s38]]
      %s40 = scalar_lea.vmem %s1, %s39
      %v41 = vld [vmem:[%s40] sm:$0x1]
      %v42 = vadd.f32 %v37, %v41
      %s43 = sadd.s32 %s28, 3
      %s44 = sld [smem:[#allocation7 + %s43]]
      %s45 = scalar_lea.vmem %s1, %s44
      %v46 = vld [vmem:[%s45] sm:$0x1]
      %v47 = vadd.f32 %v42, %v46
      %v48 = vmul.f32 %v47, 0.25
      %vm49 = vcmask 253952
      %50 = vst.msk [vmem:[#allocation2] sm:$0x1] %vm49, %v48
      %s51 = smul.u32 0, 8
      %s52 = sadd.s32 %s51, 1
      %s53 = smul.u32 %s52, 4
      %s54 = sld [smem:[#allocation7 + %s53]]
      %s55 = scalar_lea.vmem %s1, %s54
      %v56 = vld [vmem:[%s55] sm:$0x1]
      %v57 = vadd.f32 %v56, 0.0
      %s58 = sadd.s32 %s53, 1
      %s59 = sld [smem:[#allocation7 + %s58]]
      %s60 = scalar_lea.vmem %s1, %s59
      %v61 = vld [vmem:[%s60] sm:$0x1]
      %v62 = vadd.f32 %v57, %v61
      %s63 = sadd.s32 %s53, 2
      %s64 = sld [smem:[#allocation7 + %s63]]
      %s65 = scalar_lea.vmem %s1, %s64
      %v66 = vld [vmem:[%s65] sm:$0x1]
      %v67 = vadd.f32 %v62, %v66
      %s68 = sadd.s32 %s53, 3
      %s69 = sld [smem:[#allocation7 + %s68]]
      %s70 = scalar_lea.vmem %s1, %s69
      %v71 = vld [vmem:[%s70] sm:$0x1]
      %v72 = vadd.f32 %v67, %v71
      %v73 = vmul.f32 %v72, 0.25
      %74 = vst.msk [vmem:[#allocation2 + $0x1] sm:$0x1] %vm49, %v73
      %s75 = sadd.s32 %s51, 2
      %s76 = smul.u32 %s75, 4
      %s77 = sld [smem:[#allocation7 + %s76]]
      %s78 = scalar_lea.vmem %s1, %s77
      %v79 = vld [vmem:[%s78] sm:$0x1]
      %v80 = vadd.f32 %v79, 0.0
      %s81 = sadd.s32 %s76, 1
      %s82 = sld [smem:[#allocation7 + %s81]]
      %s83 = scalar_lea.vmem %s1, %s82
      %v84 = vld [vmem:[%s83] sm:$0x1]
      %v85 = vadd.f32 %v80, %v84
      %s86 = sadd.s32 %s76, 2
      %s87 = sld [smem:[#allocation7 + %s86]]
      %s88 = scalar_lea.vmem %s1, %s87
      %v89 = vld [vmem:[%s88] sm:$0x1]
      %v90 = vadd.f32 %v85, %v89
      %s91 = sadd.s32 %s76, 3
      %s92 = sld [smem:[#allocation7 + %s91]]
      %s93 = scalar_lea.vmem %s1, %s92
      %v94 = vld [vmem:[%s93] sm:$0x1]
      %v95 = vadd.f32 %v90, %v94
      %v96 = vmul.f32 %v95, 0.25
      %97 = vst.msk [vmem:[#allocation2 + $0x2] sm:$0x1] %vm49, %v96
      %s98 = sadd.s32 %s51, 3
      %s99 = smul.u32 %s98, 4
      %s100 = sld [smem:[#allocation7 + %s99]]
      %s101 = scalar_lea.vmem %s1, %s100
      %v102 = vld [vmem:[%s101] sm:$0x1]
      %v103 = vadd.f32 %v102, 0.0
      %s104 = sadd.s32 %s99, 1
      %s105 = sld [smem:[#allocation7 + %s104]]
      %s106 = scalar_lea.vmem %s1, %s105
      %v107 = vld [vmem:[%s106] sm:$0x1]
      %v108 = vadd.f32 %v103, %v107
      %s109 = sadd.s32 %s99, 2
      %s110 = sld [smem:[#allocation7 + %s109]]
      %s111 = scalar_lea.vmem %s1, %s110
      %v112 = vld [vmem:[%s111] sm:$0x1]
      %v113 = vadd.f32 %v108, %v112
      %s114 = sadd.s32 %s99, 3
      %s115 = sld [smem:[#allocation7 + %s114]]
      %s116 = scalar_lea.vmem %s1, %s115
      %v117 = vld [vmem:[%s116] sm:$0x1]
      %v118 = vadd.f32 %v113, %v117
      %v119 = vmul.f32 %v118, 0.25
      %120 = vst.msk [vmem:[#allocation2 + $0x3] sm:$0x1] %vm49, %v119
      %s121 = sadd.s32 %s51, 4
      %s122 = smul.u32 %s121, 4
      %s123 = sld [smem:[#allocation7 + %s122]]
      %s124 = scalar_lea.vmem %s1, %s123
      %v125 = vld [vmem:[%s124] sm:$0x1]
      %v126 = vadd.f32 %v125, 0.0
      %s127 = sadd.s32 %s122, 1
      %s128 = sld [smem:[#allocation7 + %s127]]
      %s129 = scalar_lea.vmem %s1, %s128
      %v130 = vld [vmem:[%s129] sm:$0x1]
      %v131 = vadd.f32 %v126, %v130
      %s132 = sadd.s32 %s122, 2
      %s133 = sld [smem:[#allocation7 + %s132]]
      %s134 = scalar_lea.vmem %s1, %s133
      %v135 = vld [vmem:[%s134] sm:$0x1]
      %v136 = vadd.f32 %v131, %v135
      %s137 = sadd.s32 %s122, 3
      %s138 = sld [smem:[#allocation7 + %s137]]
      %s139 = scalar_lea.vmem %s1, %s138
      %v140 = vld [vmem:[%s139] sm:$0x1]
      %v141 = vadd.f32 %v136, %v140
      %v142 = vmul.f32 %v141, 0.25
      %143 = vst.msk [vmem:[#allocation2 + $0x4] sm:$0x1] %vm49, %v142
      %s144 = sadd.s32 %s51, 5
      %s145 = smul.u32 %s144, 4
      %s146 = sld [smem:[#allocation7 + %s145]]
      %s147 = scalar_lea.vmem %s1, %s146
      %v148 = vld [vmem:[%s147] sm:$0x1]
      %v149 = vadd.f32 %v148, 0.0
      %s150 = sadd.s32 %s145, 1
      %s151 = sld [smem:[#allocation7 + %s150]]
      %s152 = scalar_lea.vmem %s1, %s151
      %v153 = vld [vmem:[%s152] sm:$0x1]
      %v154 = vadd.f32 %v149, %v153
      %s155 = sadd.s32 %s145, 2
      %s156 = sld [smem:[#allocation7 + %s155]]
      %s157 = scalar_lea.vmem %s1, %s156
      %v158 = vld [vmem:[%s157] sm:$0x1]
      %v159 = vadd.f32 %v154, %v158
      %s160 = sadd.s32 %s145, 3
      %s161 = sld [smem:[#allocation7 + %s160]]
      %s162 = scalar_lea.vmem %s1, %s161
      %v163 = vld [vmem:[%s162] sm:$0x1]
      %v164 = vadd.f32 %v159, %v163
      %v165 = vmul.f32 %v164, 0.25
      %166 = vst.msk [vmem:[#allocation2 + $0x5] sm:$0x1] %vm49, %v165
      %s167 = sadd.s32 %s51, 6
      %s168 = smul.u32 %s167, 4
      %s169 = sld [smem:[#allocation7 + %s168]]
      %s170 = scalar_lea.vmem %s1, %s169
      %v171 = vld [vmem:[%s170] sm:$0x1]
      %v172 = vadd.f32 %v171, 0.0
      %s173 = sadd.s32 %s168, 1
      %s174 = sld [smem:[#allocation7 + %s173]]
      %s175 = scalar_lea.vmem %s1, %s174
      %v176 = vld [vmem:[%s175] sm:$0x1]
      %v177 = vadd.f32 %v172, %v176
      %s178 = sadd.s32 %s168, 2
      %s179 = sld [smem:[#allocation7 + %s178]]
      %s180 = scalar_lea.vmem %s1, %s179
      %v181 = vld [vmem:[%s180] sm:$0x1]
      %v182 = vadd.f32 %v177, %v181
      %s183 = sadd.s32 %s168, 3
      %s184 = sld [smem:[#allocation7 + %s183]]
      %s185 = scalar_lea.vmem %s1, %s184
      %v186 = vld [vmem:[%s185] sm:$0x1]
      %v187 = vadd.f32 %v182, %v186
      %v188 = vmul.f32 %v187, 0.25
      %189 = vst.msk [vmem:[#allocation2 + $0x6] sm:$0x1] %vm49, %v188
      %s190 = sadd.s32 %s51, 7
      %s191 = smul.u32 %s190, 4
      %s192 = sld [smem:[#allocation7 + %s191]]
      %s193 = scalar_lea.vmem %s1, %s192
      %v194 = vld [vmem:[%s193] sm:$0x1]
      %v195 = vadd.f32 %v194, 0.0
      %s196 = sadd.s32 %s191, 1
      %s197 = sld [smem:[#allocation7 + %s196]]
      %s198 = scalar_lea.vmem %s1, %s197
      %v199 = vld [vmem:[%s198] sm:$0x1]
      %v200 = vadd.f32 %v195, %v199
      %s201 = sadd.s32 %s191, 2
      %s202 = sld [smem:[#allocation7 + %s201]]
      %s203 = scalar_lea.vmem %s1, %s202
      %v204 = vld [vmem:[%s203] sm:$0x1]
      %v205 = vadd.f32 %v200, %v204
      %s206 = sadd.s32 %s191, 3
      %s207 = sld [smem:[#allocation7 + %s206]]
      %s208 = scalar_lea.vmem %s1, %s207
      %v209 = vld [vmem:[%s208] sm:$0x1]
      %v210 = vadd.f32 %v205, %v209
      %v211 = vmul.f32 %v210, 0.25
      %212 = vst.msk [vmem:[#allocation2 + $0x7] sm:$0x1] %vm49, %v211
      %vm213 = vcmask 7168
      %214 = vst.msk [vmem:[#allocation4] sm:$0xff] %vm213, -inf
      %215 = vst.msk [vmem:[#allocation5] sm:$0xff] %vm213, 0.0
    $region17: #{tpu_custom_call.1} parent=1 // pred_fallthru
      _
    %v216 = vld [vmem:[#allocation2] sm:$0xff]
    %v217 = vld [vmem:[%s2] sm:$0xff]
    %v218 = vld [vmem:[%s2 + $0x8] sm:$0xff]
    %v219 = vld [vmem:[%s2 + $0x10] sm:$0xff]
    %v220 = vld [vmem:[%s2 + $0x18] sm:$0xff]
    %v221 = vld [vmem:[%s2 + $0x20] sm:$0xff]
    %v222 = vld [vmem:[%s2 + $0x28] sm:$0xff]
    %v223 = vld [vmem:[%s2 + $0x30] sm:$0xff]
    %v224 = vld [vmem:[%s2 + $0x38] sm:$0xff]
    %v225 = vld [vmem:[%s2 + $0x40] sm:$0xff]
    %v226 = vld [vmem:[%s2 + $0x48] sm:$0xff]
    %v227 = vld [vmem:[%s2 + $0x50] sm:$0xff]
    %v228 = vld [vmem:[%s2 + $0x58] sm:$0xff]
    %v229 = vld [vmem:[%s2 + $0x60] sm:$0xff]
    %v230 = vld [vmem:[%s2 + $0x68] sm:$0xff]
    %v231 = vld [vmem:[%s2 + $0x70] sm:$0xff]
    %v232 = vld [vmem:[%s2 + $0x78] sm:$0xff]
    %v233 = vld [vmem:[%s3] sm:$0x1]
    %v235 = vperm.slane %v233, 0
    %vm237 = vcmask 261120
    %v239 = vsel %vm237, %v216, 0
    %v242 = vsel %vm237, %v217, 0
    %v245 = vsel %vm237, %v218, 0
    %v248 = vsel %vm237, %v219, 0
    %v251 = vsel %vm237, %v220, 0
    %v254 = vsel %vm237, %v221, 0
    %v257 = vsel %vm237, %v222, 0
    %v260 = vsel %vm237, %v223, 0
    %v263 = vsel %vm237, %v224, 0
    %v266 = vsel %vm237, %v225, 0
    %v269 = vsel %vm237, %v226, 0
    %v272 = vsel %vm237, %v227, 0
    %v275 = vsel %vm237, %v228, 0
    %v278 = vsel %vm237, %v229, 0
    %v281 = vsel %vm237, %v230, 0
    %v284 = vsel %vm237, %v231, 0
    %v287 = vsel %vm237, %v232, 0
    %289 = vmatpush.xpose.msra.mxu0 %v287
    %290 = vmatpush.xpose.msra.mxu0 %v284
    %291 = vmatpush.xpose.msra.mxu0 %v281
    %292 = vmatpush.xpose.msra.mxu0 %v278
    %293 = vmatpush.xpose.msra.mxu0 %v275
    %294 = vmatpush.xpose.msra.mxu0 %v272
    %295 = vmatpush.xpose.msra.mxu0 %v269
    %296 = vmatpush.xpose.msra.mxu0 %v266
    %297 = vmatpush.xpose.msra.mxu0 %v263
    %298 = vmatpush.xpose.msra.mxu0 %v260
    %299 = vmatpush.xpose.msra.mxu0 %v257
    %300 = vmatpush.xpose.msra.mxu0 %v254
    %301 = vmatpush.xpose.msra.mxu0 %v251
    %302 = vmatpush.xpose.msra.mxu0 %v248
    %303 = vmatpush.xpose.msra.mxu0 %v245
    %304 = vmatpush.xpose.msra.mxu0 %v242
    %305 = vmatmul.f32.gmra.mxu0 %v239
    %v306 = vpop.f32.mrf.mxu0
    %v307 = vadd.f32 %v235, %v306
    %308 = vdwg.mxu0
    %s309 = smul.u32 0, 8
    %s310 = scalar_lea.vmem [#allocation3], %s309
    %311 = vst [vmem:[%s310] sm:$0xff] %v307
    %v312 = vld [vmem:[#allocation4] sm:$0xff]
    %313 = vmax.xlane.f32.xlu0 %v307
    %v314 = vpop.xlane.xlu0 %313
    %v315 = vmax.f32 %v312, %v314
    %v316 = vld [vmem:[#allocation5] sm:$0xff]
    %v317 = vsub.f32 %v312, %v315
    %v318 = vmul.f32 %v317, 1.442695
    %v319 = vpow.pop %v318
    %v320 = vmul.f32 %v316, %v319
    %322 = vset.pattern.permute.xlu0 0
    %323 = vperm.xlu0 %322, %v315
    %v324 = vpop.permute.xlu0 %323
    %v326 = vsub.f32 %v307, %v324
    %v327 = vmul.f32 %v326, 1.442695
    %v328 = vpow.pop %v327
    %329 = vadd.xlane.f32.xlu0 %v328
    %v330 = vpop.xlane.xlu0 %329
    %v331 = vadd.f32 %v320, %v330
    %vm332 = vcmask 7168
    %333 = vst.msk [vmem:[#allocation5] sm:$0xff] %vm332, %v331
    %334 = vst.msk [vmem:[#allocation4] sm:$0xff] %vm332, %v315
    // Predicated region
    $region18: #{tpu_custom_call.1} parent=1 // pred_check
      %p335 = pneg %p24
    $region19: #{tpu_custom_call.1} parent=1 // pred_check_branch
      %337 = sbr.rel (%p335) target = $region21
    $region20: #{tpu_custom_call.1} parent=1 // pred_region
      %v338 = vld [vmem:[#allocation4] sm:$0xff]
      %v339 = vld [vmem:[#allocation5] sm:$0xff]
      %v340 = vlog2.pop %v339
      %v341 = vmul.f32 %v340, 0.6931472
      %v342 = vadd.f32 %v338, %v341
      %v343 = vld [vmem:[#allocation3] sm:$0xff]
      %345 = vset.pattern.permute.xlu0 0
      %346 = vperm.xlu0 %345, %v342
      %v347 = vpop.permute.xlu0 %346
      %v349 = vsub.f32 %v343, %v347
      %350 = vst [vmem:[#allocation8] sm:$0xff] %v349
    $region21: #{tpu_custom_call.1} parent=1 // pred_fallthru
      _
    // Predicated region
    $region22: #{tpu_custom_call.1} parent=1 // pred_check
      _
    $region23: #{tpu_custom_call.1} parent=1 // pred_check_branch
      %352 = sbr.rel (0) target = $region25
    $region24: #{tpu_custom_call.1} parent=1 // pred_region
      %354 = vsyncadd [#allocation9], 0
      %s356 = sshll.u32 [#allocation8], 4
      %s357 = int_to_ptr.vmem [resolvable:$true] %s356
      %s358 = sshll.u32 %s4, 4
      %s359 = int_to_ptr.hbm [resolvable:$true] %s358
      %361 = dma.vmem_to_hbm [thread:$0]  %s357, 128, %s359, [#allocation9]
    $region25: #{tpu_custom_call.1} parent=1 // pred_fallthru
      _
    // Predicated region
    $region26: #{tpu_custom_call.1} parent=1 // pred_check
      _
    $region27: #{tpu_custom_call.1} parent=1 // pred_check_branch
      %363 = sbr.rel (0) target = $region29
    $region28: #{tpu_custom_call.1} parent=1 // pred_region
      %365 = dma.done [#allocation9], 128
    $region29: #{tpu_custom_call.1} parent=1 // pred_fallthru
      _
    %366 = vsyncpa [#allocation9], 1

</llo_original>
